<compile_context>
chip_gen: v6e
topology: v6e:2x2x1
jax: 0.10.0
libtpu: 0.0.40
codegen_flags: <defaults>
</compile_context>

<pallas_src>
import functools

import jax
import jax.numpy as jnp
from jax import lax  # noqa: F401  (kept for users extending the kernels)
from jax.experimental import pallas as pl
from jax.experimental.pallas import tpu as pltpu

_LANE = 128
_SUBLANE = 8


def _detect_phys_vmem_bytes():
    """Physical per-core VMEM; used to scale block budget / scoped vmem limit."""
    try:
        info = pltpu.get_tpu_info()
        v = getattr(info, "vmem_capacity_bytes", None)
        if v:
            return int(v)
    except Exception:
        pass
    try:
        kind = jax.devices()[0].device_kind.lower()
        if ("v4" in kind) or ("v5" in kind) or ("v6" in kind):
            return 128 * 1024 * 1024
    except Exception:
        pass
    return 64 * 1024 * 1024  # conservative (v7x-sized)


_PHYS_VMEM = _detect_phys_vmem_bytes()
if _PHYS_VMEM >= 128 * 1024 * 1024:     # v5e / v6e: mem-bound -> big blocks
    _VMEM_LIMIT = 64 * 1024 * 1024
    _BLOCK_BUDGET = 8 * 1024 * 1024
else:                                    # v7x: 64 MiB VMEM / core -> stay tight
    _VMEM_LIMIT = 32 * 1024 * 1024
    _BLOCK_BUDGET = 4 * 1024 * 1024


# ----------------------------------------------------------------------------
# Tile selection helpers
# ----------------------------------------------------------------------------
def _choose_tile_f(F, B, itemsize, budget=None, min_grid=2):
    """Largest multiple-of-128 divisor of F with a (B, TILE_F) block under budget,
    preferring a grid of >= min_grid steps (so both v7x TensorCores get work)."""
    if F % _LANE != 0:
        return F  # TODO(synk): non-128-multiple F falls back to one untiled block
    if budget is None:
        budget = _BLOCK_BUDGET
    cap = max(budget // max(1, B * itemsize), _LANE)
    if F >= min_grid * _LANE:
        cap = min(cap, F // min_grid)
    cap = min(cap, F)
    cap -= cap % _LANE
    cap = max(cap, _LANE)
    d = cap
    while d >= _LANE:
        if F % d == 0:
            return d
        d -= _LANE
    return F


def _choose_tile_b(B, F, itemsize, budget=None, min_grid=2):
    """Largest multiple-of-8 divisor of B with a (TILE_B, F) block under budget,
    preferring a grid of >= min_grid steps."""
    if B % _SUBLANE != 0:
        return B
    if budget is None:
        budget = _BLOCK_BUDGET
    cap = max(budget // max(1, F * itemsize), _SUBLANE)
    if B >= min_grid * _SUBLANE:
        cap = min(cap, B // min_grid)
    cap = min(cap, B)
    cap -= cap % _SUBLANE
    cap = max(cap, _SUBLANE)
    d = cap
    while d >= _SUBLANE:
        if B % d == 0:
            return d
        d -= _SUBLANE
    return B


def _choose_chunk_f(F, tile_b, target_bytes=64 * 1024, max_chunks=32):
    """F-chunk for the punish_best inner loops: keeps the per-chunk f32 slab near
    target_bytes (bounds vreg/VMEM live data) while capping unrolled chunk count."""
    if F % _LANE != 0:
        return F
    target = max(_LANE, (target_bytes // (4 * max(tile_b, 1))) // _LANE * _LANE)
    target = max(target, -(-F // max_chunks))
    d = ((target + _LANE - 1) // _LANE) * _LANE
    while d < F:
        if F % d == 0:
            return d
        d += _LANE
    return F


# ----------------------------------------------------------------------------
# Kernel 1: fused batch statistics + running-stats online update (F-tiled)
# ----------------------------------------------------------------------------
def _stats_update_kernel(h_ref, rmean_ref, rvar_ref, coef_ref,
                         nmean_ref, nvar_ref):
    h = h_ref[...].astype(jnp.float32)                      # (B, TILE_F), read once
    inv_b = 1.0 / h.shape[0]
    sum_h = jnp.sum(h, axis=0, keepdims=True)               # (1, TILE_F)
    sum_h2 = jnp.sum(h * h, axis=0, keepdims=True)          # (1, TILE_F)
    bmean = sum_h * inv_b
    # Single-pass biased variance E[h^2] - E[h]^2.  Clamp guards against the small
    # negative values cancellation can produce for strongly off-centered activations.
    bvar = jnp.maximum(sum_h2 * inv_b - bmean * bmean, 0.0)

    rmean = rmean_ref[...]                                  # (1, TILE_F) f32
    rvar = rvar_ref[...]
    dm = bmean - rmean
    # scalar coefficients live in SMEM -> no recompilation when h_count changes
    nmean_ref[...] = coef_ref[0] * rmean + coef_ref[1] * bmean
    nvar_ref[...] = coef_ref[2] * rvar + coef_ref[3] * bvar + coef_ref[4] * (dm * dm)


def fused_stats_update(h2d, rmean, rvar, coefs, *, tile_f=None):
    B, F = h2d.shape
    if tile_f is None:
        tile_f = _choose_tile_f(F, B, h2d.dtype.itemsize)
    if F % tile_f != 0 or not (tile_f == F or tile_f % _LANE == 0):
        raise ValueError(f"tile_f={tile_f} incompatible with F={F}")

    row_spec = pl.BlockSpec((1, tile_f), lambda i: (0, i))
    return pl.pallas_call(
        _stats_update_kernel,
        grid=(F // tile_f,),
        in_specs=[pl.BlockSpec((B, tile_f), lambda i: (0, i)),
                  row_spec, row_spec,
                  pl.BlockSpec(memory_space=pltpu.MemorySpace.SMEM)],
        out_specs=(row_spec, row_spec),
        out_shape=(jax.ShapeDtypeStruct((1, F), jnp.float32),
                   jax.ShapeDtypeStruct((1, F), jnp.float32)),
        # running stats updated in place (rmean -> new_mean, rvar -> new_var)
        # NOTE: in eager mode XLA may insert a defensive copy before aliasing.
        input_output_aliases={1: 0, 2: 1},
        compiler_params=pltpu.CompilerParams(
            dimension_semantics=("parallel",),
            vmem_limit_bytes=_VMEM_LIMIT),
    )(h2d, rmean, rvar, coefs)


def _update_coefficients(first, n, batch_size):
    """Host-side scalar coefficients for the fused update (runtime data, not traced)."""
    if first:
        c = [0.0, 1.0, 0.0, batch_size / (batch_size - 1.0), 0.0]
    else:
        denom = n + 1.0 - 1.0 / batch_size
        c = [n / (n + 1.0), 1.0 / (n + 1.0),
             (n - 1.0 / batch_size) / denom,
             1.0 / denom,
             1.0 / ((1.0 + 1.0 / n) * denom)]
    return jnp.asarray(c, dtype=jnp.float32)


# tiny fused op on the (1, F) running var: done once per step, outside the hot kernel
@jax.jit
def _inv_denom_from_var(rvar):
    return 1.0 / (rvar + jnp.mean(rvar) * 0.01)


# ----------------------------------------------------------------------------
# Kernel 2: punish_best — mask the max-deviation feature per sample (B-tiled)
# ----------------------------------------------------------------------------
def _punish_best_kernel(h_ref, mean_ref, invd_ref, out_ref, *, chunk_f):
    tile_b, F = h_ref.shape
    n_chunks = F // chunk_f

    def dev_chunk(c):
        sl = slice(c * chunk_f, (c + 1) * chunk_f)          # static lane slice
        h_nat = h_ref[:, sl]
        h = h_nat.astype(jnp.float32)
        mean = mean_ref[:, sl]                               # (1, chunk_f)
        d = h - mean
        return h, mean, d * d * invd_ref[:, sl]              # dev: (tile_b, chunk_f)

    if n_chunks == 1:
        # small-F fast path: single pass, dev kept live (fits vregs / small VMEM)
        h, mean, dev = dev_chunk(0)
        row_max = jnp.max(dev, axis=-1, keepdims=True)
        # (1 - m*(1+ratio))*h + (mean + ratio*h)*m  ==  where(m, mean, h)   (exactly)
        out_ref[...] = jnp.where(dev == row_max, mean, h).astype(out_ref.dtype)
        return

    # Pass 1: per-row max of dev, F-chunked so only a (tile_b, chunk_f) f32 slab is live
    row_max = jnp.full((tile_b, 1), -jnp.inf, dtype=jnp.float32)
    for c in range(n_chunks):
        _, _, dev = dev_chunk(c)
        row_max = jnp.maximum(row_max, jnp.max(dev, axis=-1, keepdims=True))

    # Pass 2: recompute dev per chunk (cheaper than spilling the full-F f32 dev) and
    # write the blend straight back, chunk by chunk (lane-dense stores).
    for c in range(n_chunks):
        h, mean, dev = dev_chunk(c)
        out_ref[:, c * chunk_f:(c + 1) * chunk_f] = jnp.where(
            dev == row_max, mean, h).astype(out_ref.dtype)


def punish_best(h2d, rmean, inv_denom, *, tile_b=None, chunk_f=None):
    B, F = h2d.shape
    if tile_b is None:
        tile_b = _choose_tile_b(B, F, max(h2d.dtype.itemsize, 4))
    if B % tile_b != 0 or not (tile_b == B or tile_b % _SUBLANE == 0):
        raise ValueError(f"tile_b={tile_b} incompatible with B={B}")
    if chunk_f is None:
        chunk_f = _choose_chunk_f(F, tile_b)
    if F % chunk_f != 0 or not (chunk_f == F or chunk_f % _LANE == 0):
        raise ValueError(f"chunk_f={chunk_f} incompatible with F={F}")

    row_spec = pl.BlockSpec((1, F), lambda i: (0, 0))
    kernel = functools.partial(_punish_best_kernel, chunk_f=chunk_f)
    # NOTE: h2d -> out aliasing is possible under jit with donation, but is omitted
    # here so the caller's activation buffer stays valid in eager mode.
    return pl.pallas_call(
        kernel,
        grid=(B // tile_b,),
        in_specs=[pl.BlockSpec((tile_b, F), lambda i: (i, 0)),
                  row_spec, row_spec],
        out_specs=pl.BlockSpec((tile_b, F), lambda i: (i, 0)),
        out_shape=jax.ShapeDtypeStruct((B, F), h2d.dtype),
        compiler_params=pltpu.CompilerParams(
            dimension_semantics=("parallel",),
            vmem_limit_bytes=_VMEM_LIMIT),
    )(h2d, rmean, inv_denom)


# ----------------------------------------------------------------------------
# Stateful wrapper mirroring the PyTorch module
# ----------------------------------------------------------------------------
class EmeL:
    def __init__(self, h_upper=10, ratio=1.0, t=1, h_mean=None, h_var=None,
                 tile_f=None, tile_b=None, chunk_f=None):
        self.h_var = h_var
        self.h_mean = h_mean
        self.h_count = 0
        self.h_upper = h_upper
        self.emel_loss = 0.0
        self.ratio = ratio          # ratio cancels algebraically in punish_best (t == 1)
        self.t = t
        self.training = True
        self.tile_f = tile_f
        self.tile_b = tile_b
        self.chunk_f = chunk_f
        self._coef_cache = {}       # (first, n, B) -> device array; no per-step H2D

    def _coefs(self, first, n, B):
        key = (bool(first), None if first else float(n), float(B))
        c = self._coef_cache.get(key)
        if c is None:
            c = _update_coefficients(first, n, float(B))
            self._coef_cache[key] = c
        return c

    def __call__(self, h):
        if not self.training:
            return h
        shape = h.shape
        B = shape[0]
        h2d = h.reshape(B, -1)                   # native dtype: no extra f32 HBM copy
        F = h2d.shape[1]
        self.h_count += 1

        first = self.h_var is None
        if first:
            n = None
            rmean = jnp.zeros((1, F), jnp.float32)
            rvar = jnp.zeros((1, F), jnp.float32)
        else:
            n = float(min(self.h_count, self.h_upper))
            rmean, rvar = self.h_mean, self.h_var

        coefs = self._coefs(first, n, B)
        self.h_mean, self.h_var = fused_stats_update(
            h2d, rmean, rvar, coefs, tile_f=self.tile_f)

        if (not first) and self.h_count > self.h_upper:
            if self.t > 1:
                # TODO(synk): punish_best_k (kthvalue) not implemented; t == 1 only.
                raise NotImplementedError("punish_best_k (t > 1) not implemented")
            # (1, F) reciprocal precomputed once per step, outside the hot kernel
            inv_denom = _inv_denom_from_var(self.h_var)
            h2d = punish_best(h2d, self.h_mean, inv_denom,
                              tile_b=self.tile_b, chunk_f=self.chunk_f)
            # NOTE: output keeps the input dtype (PyTorch would promote to f32 here).
            h = h2d.reshape(shape)
        return h


# ----------------------------------------------------------------------------
# Pure-JAX reference (mirrors the PyTorch math, long-form blend) for checking
# ----------------------------------------------------------------------------
class EmeLRef:
    def __init__(self, h_upper=10, ratio=1.0):
        self.h_var = None
        self.h_mean = None
        self.h_count = 0
        self.h_upper = h_upper
        self.ratio = ratio

    def __call__(self, h):
        shape = h.shape
        B = shape[0]
        h_ = h.reshape(B, -1).astype(jnp.float32)
        h_u = jnp.mean(h_, axis=0, keepdims=True)
        h_v = jnp.var(h_, axis=0, keepdims=True)
        self.h_count += 1
        if self.h_var is None:
            self.h_var = h_v / (B - 1.0) * B
            self.h_mean = h_u
        elif self.h_count <= self.h_upper:
            n = self.h_count
            self.h_var = (self.h_var * (n - 1.0 / B) + h_v
                          + (h_u - self.h_mean) ** 2 / (1 + 1.0 / n)) / (n + 1 - 1.0 / B)
            self.h_mean = (self.h_mean * n + h_u) / (n + 1.0)
        else:
            n = self.h_upper
            self.h_var = (self.h_var * (n - 1.0 / B) + h_v
                          + (h_u - self.h_mean) ** 2 / (1 + 1.0 / n)) / (n + 1 - 1.0 / B)
            self.h_mean = (self.h_mean * n + h_u) / (n + 1.0)
            dev = (h_ - self.h_mean) ** 2 / (self.h_var + jnp.mean(self.h_var) / 100.0)
            max_in_batch = jnp.max(dev, axis=1, keepdims=True)
            mask = (dev == max_in_batch).astype(jnp.float32)
            inc = self.h_mean + self.ratio * h_
            h_ = (1.0 - mask * (1.0 + self.ratio)) * h_ + inc * mask
            h = h_.reshape(shape)
        return h


if __name__ == "__main__":
    key = jax.random.PRNGKey(0)

    B, C, H, W = 16, 4, 16, 16         # F = C*H*W = 1024
    h_upper = 2                        # small so the punish_best branch triggers

    # instance A: auto-selected tiles (tile_f=512 -> grid 2, tile_b=8 -> grid 2,
    #             chunk_f=F -> single-pass fast path in punish_best)
    emel_a = EmeL(h_upper=h_upper, ratio=1.0, t=1)
    # instance B: forces smaller tiles + the F-chunked two-pass punish_best path
    emel_b = EmeL(h_upper=h_upper, ratio=1.0, t=1, tile_f=256, tile_b=8, chunk_f=256)
    ref = EmeLRef(h_upper=h_upper, ratio=1.0)

    out_a = out_b = out_ref = None
    for step in range(4):              # steps 3 and 4 hit the punish_best path
        key, sub = jax.random.split(key)
        x = jax.random.normal(sub, (B, C, H, W), dtype=jnp.float32)
        out_ref = ref(x)
        out_a = emel_a(x)
        out_b = emel_b(x)

    jax.block_until_ready((out_a, out_b, out_ref,
                           emel_a.h_mean, emel_a.h_var,
                           emel_b.h_mean, emel_b.h_var))

    assert out_a.shape == (B, C, H, W)
    assert out_a.dtype == x.dtype
    assert jnp.allclose(out_a, out_ref, rtol=1e-4, atol=1e-4), "A mismatch vs reference"
    assert jnp.allclose(out_b, out_ref, rtol=1e-4, atol=1e-4), "B mismatch vs reference"
    assert jnp.allclose(out_a, out_b, rtol=1e-5, atol=1e-5), "chunked != fast path"
    assert jnp.allclose(emel_a.h_mean, ref.h_mean, rtol=1e-4, atol=1e-4)
    assert jnp.allclose(emel_a.h_var, ref.h_var, rtol=1e-4, atol=1e-4)
    assert jnp.allclose(emel_b.h_mean, ref.h_mean, rtol=1e-4, atol=1e-4)
    assert jnp.allclose(emel_b.h_var, ref.h_var, rtol=1e-4, atol=1e-4)

    print("KERNEL_OK")
</pallas_src>

<mosaic_0001>
module attributes {stable_mosaic.version = 11 : i64} {
  func.func @_stats_update_kernel(%arg0: i32, %arg1: memref<16x512xf32, #tpu.memory_space<vmem>>, %arg2: memref<1x512xf32, #tpu.memory_space<vmem>>, %arg3: memref<1x512xf32, #tpu.memory_space<vmem>>, %arg4: memref<5xf32, #tpu.memory_space<smem>>, %arg5: memref<1x512xf32, #tpu.memory_space<vmem>>, %arg6: memref<1x512xf32, #tpu.memory_space<vmem>>) attributes {dimension_semantics = [#tpu.dimension_semantics<parallel>], iteration_bounds = array<i64: 2>, scalar_prefetch = 0 : i64, scratch_operands = 0 : i64, tpu.core_type = #tpu.core_type<tc>, window_params = [{transform_indices = @transform_0, window_bounds = array<i64: 16, 512>}, {transform_indices = @transform_1, window_bounds = array<i64: 1, 512>}, {transform_indices = @transform_2, window_bounds = array<i64: 1, 512>}, {transform_indices = @transform_3, window_bounds = array<i64: 5>}, {transform_indices = @transform_4, window_bounds = array<i64: 1, 512>}, {transform_indices = @transform_5, window_bounds = array<i64: 1, 512>}]} {
    %c0 = arith.constant 0 : index
    %c0_0 = arith.constant 0 : index
    %0 = vector.load %arg1[%c0, %c0_0] : memref<16x512xf32, #tpu.memory_space<vmem>>, vector<16x512xf32>
    %cst = arith.constant dense<0.000000e+00> : vector<512xf32>
    %1 = vector.multi_reduction <add>, %0, %cst [0] : vector<16x512xf32> to vector<512xf32>
    %2 = vector.shape_cast %1 : vector<512xf32> to vector<1x512xf32>
    %3 = arith.mulf %0, %0 : vector<16x512xf32>
    %cst_1 = arith.constant dense<0.000000e+00> : vector<512xf32>
    %4 = vector.multi_reduction <add>, %3, %cst_1 [0] : vector<16x512xf32> to vector<512xf32>
    %5 = vector.shape_cast %4 : vector<512xf32> to vector<1x512xf32>
    %cst_2 = arith.constant 6.250000e-02 : f32
    %6 = vector.broadcast %cst_2 : f32 to vector<1x512xf32>
    %7 = arith.mulf %2, %6 : vector<1x512xf32>
    %cst_3 = arith.constant 6.250000e-02 : f32
    %8 = vector.broadcast %cst_3 : f32 to vector<1x512xf32>
    %9 = arith.mulf %5, %8 : vector<1x512xf32>
    %10 = arith.mulf %7, %7 : vector<1x512xf32>
    %11 = arith.subf %9, %10 : vector<1x512xf32>
    %cst_4 = arith.constant 0.000000e+00 : f32
    %12 = vector.broadcast %cst_4 : f32 to vector<1x512xf32>
    %13 = arith.maximumf %11, %12 : vector<1x512xf32>
    %c0_5 = arith.constant 0 : index
    %c0_6 = arith.constant 0 : index
    %14 = vector.load %arg2[%c0_5, %c0_6] : memref<1x512xf32, #tpu.memory_space<vmem>>, vector<1x512xf32>
    %c0_7 = arith.constant 0 : index
    %c0_8 = arith.constant 0 : index
    %15 = vector.load %arg3[%c0_7, %c0_8] : memref<1x512xf32, #tpu.memory_space<vmem>>, vector<1x512xf32>
    %16 = arith.subf %7, %14 : vector<1x512xf32>
    %c0_9 = arith.constant 0 : index
    %17 = memref.load %arg4[%c0_9] : memref<5xf32, #tpu.memory_space<smem>>
    %18 = vector.broadcast %17 : f32 to vector<1x512xf32>
    %19 = arith.mulf %18, %14 : vector<1x512xf32>
    %c1 = arith.constant 1 : index
    %20 = memref.load %arg4[%c1] : memref<5xf32, #tpu.memory_space<smem>>
    %21 = vector.broadcast %20 : f32 to vector<1x512xf32>
    %22 = arith.mulf %21, %7 : vector<1x512xf32>
    %23 = arith.addf %19, %22 : vector<1x512xf32>
    %c0_10 = arith.constant 0 : index
    %c0_11 = arith.constant 0 : index
    %24 = vector.load %arg5[%c0_10, %c0_11] : memref<1x512xf32, #tpu.memory_space<vmem>>, vector<1x512xf32>
    tpu.vector_store %arg5[%c0_10, %c0_11], %23 {strides = array<i32>} : memref<1x512xf32, #tpu.memory_space<vmem>>, vector<1x512xf32>,
    %c2 = arith.constant 2 : index
    %25 = memref.load %arg4[%c2] : memref<5xf32, #tpu.memory_space<smem>>
    %26 = vector.broadcast %25 : f32 to vector<1x512xf32>
    %27 = arith.mulf %26, %15 : vector<1x512xf32>
    %c3 = arith.constant 3 : index
    %28 = memref.load %arg4[%c3] : memref<5xf32, #tpu.memory_space<smem>>
    %29 = vector.broadcast %28 : f32 to vector<1x512xf32>
    %30 = arith.mulf %29, %13 : vector<1x512xf32>
    %31 = arith.addf %27, %30 : vector<1x512xf32>
    %c4 = arith.constant 4 : index
    %32 = memref.load %arg4[%c4] : memref<5xf32, #tpu.memory_space<smem>>
    %33 = arith.mulf %16, %16 : vector<1x512xf32>
    %34 = vector.broadcast %32 : f32 to vector<1x512xf32>
    %35 = arith.mulf %34, %33 : vector<1x512xf32>
    %36 = arith.addf %31, %35 : vector<1x512xf32>
    %c0_12 = arith.constant 0 : index
    %c0_13 = arith.constant 0 : index
    %37 = vector.load %arg6[%c0_12, %c0_13] : memref<1x512xf32, #tpu.memory_space<vmem>>, vector<1x512xf32>
    tpu.vector_store %arg6[%c0_12, %c0_13], %36 {strides = array<i32>} : memref<1x512xf32, #tpu.memory_space<vmem>>, vector<1x512xf32>,
    return
  }
  func.func @transform_0(%arg0: i32) -> (i32, i32) {
    %c0_i32 = arith.constant 0 : i32
    %c0_i32_0 = arith.constant 0 : i32
    return %c0_i32, %arg0 : i32, i32
  }
  func.func @transform_1(%arg0: i32) -> (i32, i32) {
    %c0_i32 = arith.constant 0 : i32
    %c0_i32_0 = arith.constant 0 : i32
    return %c0_i32, %arg0 : i32, i32
  }
  func.func @transform_2(%arg0: i32) -> (i32, i32) {
    %c0_i32 = arith.constant 0 : i32
    %c0_i32_0 = arith.constant 0 : i32
    return %c0_i32, %arg0 : i32, i32
  }
  func.func @transform_3(%arg0: i32) -> i32 {
    %c0_i32 = arith.constant 0 : i32
    %c0_i32_0 = arith.constant 0 : i32
    return %c0_i32 : i32
  }
  func.func @transform_4(%arg0: i32) -> (i32, i32) {
    %c0_i32 = arith.constant 0 : i32
    %c0_i32_0 = arith.constant 0 : i32
    return %c0_i32, %arg0 : i32, i32
  }
  func.func @transform_5(%arg0: i32) -> (i32, i32) {
    %c0_i32 = arith.constant 0 : i32
    %c0_i32_0 = arith.constant 0 : i32
    return %c0_i32, %arg0 : i32, i32
  }
}

</mosaic_0001>

<llo_original>
// kernel: tpu_custom_call.1
$region0: #{tpu_custom_call.1}
  #allocation0 [shape = 'u32[]', space=smem, size = 0x4, offset = 0x4, fixed_abs, tag = 'smem constant byte address 0x4 - core index']
  #allocation1 [shape = 'u32[144,128]{1,0:T(1,128)}', space=vmem, size = 0x12000, scoped, tag = 'internal scratch']
  %s0 = inlined_call_operand.hbm [shape: f32[16,1024], index: 0, kind: input, shape index: {}]
  %s1 = inlined_call_operand.hbm [shape: f32[1,1024], index: 1, kind: input, shape index: {}, may-alias: {1,4}]
  %s2 = inlined_call_operand.hbm [shape: f32[1,1024], index: 2, kind: input, shape index: {}, may-alias: {2,5}]
  %s3 = inlined_call_operand.vmem [shape: f32[5], index: 3, kind: input, shape index: {}]
  %s4 = inlined_call_operand.hbm [shape: f32[1,1024], index: 4, kind: output, shape index: {0}, may-alias: {1,4}]
  %s5 = inlined_call_operand.hbm [shape: f32[1,1024], index: 5, kind: output, shape index: {1}, may-alias: {2,5}]
  %6 = xla_tuple %s4, %s5
  %s7 = sld [smem:[#allocation0]]
  $region73: #{tpu_custom_call.1} parent=0
    _
  %s9 = ssub.s32 1, %s7
  %s10 = scalar_select 0, %s9, %s7
  $region1: #{tpu_custom_call.1} parent=0
    #allocation2 [shape = 'u8[65536]{0}', space=vmem, size = 0x10000, scoped, tag = 'input window, operand 0']
    #allocation3 [shape = 's32[2]{0}', space=sflag, size = 0x8, scoped, tag = 'scoped memory for tpu_custom_call.1']
    #allocation4 [shape = 's32[2]{0}', space=sflag, size = 0x8, scoped, tag = 'scoped memory for tpu_custom_call.1']
    #allocation5 [shape = 's32[2]{0}', space=sflag, size = 0x8, scoped, tag = 'scoped memory for tpu_custom_call.1']
    #allocation6 [shape = 'u8[4096]{0}', space=vmem, size = 0x1000, scoped, tag = 'input window, operand 1']
    #allocation7 [shape = 's32[2]{0}', space=sflag, size = 0x8, scoped, tag = 'scoped memory for tpu_custom_call.1']
    #allocation8 [shape = 'u8[4096]{0}', space=vmem, size = 0x1000, scoped, tag = 'input window, operand 2']
    #allocation9 [shape = 'u8[512]{0}', space=smem, size = 0x200, scoped, tag = 'input window, operand 3, single buffered']
    #allocation10 [shape = 'u8[4096]{0}', space=vmem, size = 0x1000, scoped, tag = 'output window, operand 0']
    #allocation11 [shape = 'u8[4096]{0}', space=vmem, size = 0x1000, scoped, tag = 'output window, operand 1']
    #allocation12 [shape = 's32[2]{0}', space=sflag, size = 0x8, scoped, tag = 'scoped memory for tpu_custom_call.1']
    %11 = vsyncpa [#allocation3], 0
    %s12 = scalar_lea.sflag [#allocation3], 1
    %13 = vsyncpa %s12, 0
    %14 = vsyncpa [#allocation7], 0
    %s15 = scalar_lea.sflag [#allocation7], 1
    %16 = vsyncpa %s15, 0
    %17 = vsyncpa [#allocation5], 0
    %18 = vsyncpa [#allocation4], 0
    %s19 = scalar_lea.sflag [#allocation4], 1
    %20 = vsyncpa %s19, 0
    %21 = vsyncpa [#allocation12], 0
    %s22 = scalar_lea.sflag [#allocation12], 1
    %23 = vsyncpa %s22, 0
    loop: start=0, step=1, limit=4
    $region2: #{tpu_custom_call.1} parent=1 // loop_pre_header
      _
    $region3: #{tpu_custom_call.1} parent=1 // loop_header
      %s25 = sphi 0, %s29
      %p26 = scmp.ge.s32.totalorder %s25, 4
      %s35 = sphi 0, %s37
      %s38 = sphi 0, %s35
      %s39 = sphi 0, %s38
      %s55 = sphi 0, %s39
      %s61 = sphi 0, %s63
      %s64 = sphi 0, %s61
      %s65 = sphi 0, %s64
      %s81 = sphi 0, %s65
      %s87 = sphi 0, %s89
      %s90 = sphi 0, %s87
      %s91 = sphi 0, %s90
      %s107 = sphi 0, %s91
      %s111 = sphi 0, %s111
      %s113 = sphi 0, %s111
      %s114 = sphi 0, %s113
      %s128 = sphi 0, %s114
      %s134 = sphi 0, %s136
      %s137 = sphi 0, %s134
      %s138 = sphi 0, %s137
      %s154 = sphi 0, %s138
      %s160 = sphi 0, %s162
      %s163 = sphi 0, %s160
      %s164 = sphi 0, %s163
      %s180 = sphi 0, %s164
    $region4: #{tpu_custom_call.1} parent=1 // loop_header_branch
      %28 = sbr.rel (%p26) target = $region8
    $region5: #{tpu_custom_call.1} parent=1 // loop_body
      %s30 = ssub.s32 %s25, 1
      %s31 = ssub.s32 %s25, 2
      %s32 = sadd.s32 %s25, 1
      %s33 = ssub.s32 %s25, %s32
      %p34 = scmp.eq.s32.totalorder %s33, 0
      %s36 = sadd.s32 %s35, 1
      %s37 = scalar_select %p34, %s35, %s36
      %p40 = pneg %p34
      %p41 = scmp.eq.s32.totalorder %s25, 1
      %p42 = por %p40, %p41
      %p43 = scmp.ne.s32.totalorder %s35, %s38
      %p44 = scmp.eq.s32.totalorder %s25, 0
      %p45 = por %p43, %p44
      %p46 = scmp.ne.s32.totalorder %s35, %s38
      %p47 = scmp.eq.s32.totalorder %s30, 1
      %p48 = por %p46, %p47
      %p49 = scmp.ne.s32.totalorder %s38, %s39
      %p50 = scmp.eq.s32.totalorder %s30, 0
      %p51 = por %p49, %p50
      %p52 = scmp.ne.s32.totalorder %s38, %s39
      %p53 = scmp.eq.s32.totalorder %s31, 1
      %p54 = por %p52, %p53
      %p56 = scmp.ne.s32.totalorder %s39, %s55
      %p57 = scmp.eq.s32.totalorder %s31, 0
      %p58 = por %p56, %p57
      %s59 = ssub.s32 %s25, %s32
      %p60 = scmp.eq.s32.totalorder %s59, 0
      %s62 = sadd.s32 %s61, 1
      %s63 = scalar_select %p60, %s61, %s62
      %p66 = pneg %p60
      %p67 = scmp.eq.s32.totalorder %s25, 1
      %p68 = por %p66, %p67
      %p69 = scmp.ne.s32.totalorder %s61, %s64
      %p70 = scmp.eq.s32.totalorder %s25, 0
      %p71 = por %p69, %p70
      %p72 = scmp.ne.s32.totalorder %s61, %s64
      %p73 = scmp.eq.s32.totalorder %s30, 1
      %p74 = por %p72, %p73
      %p75 = scmp.ne.s32.totalorder %s64, %s65
      %p76 = scmp.eq.s32.totalorder %s30, 0
      %p77 = por %p75, %p76
      %p78 = scmp.ne.s32.totalorder %s64, %s65
      %p79 = scmp.eq.s32.totalorder %s31, 1
      %p80 = por %p78, %p79
      %p82 = scmp.ne.s32.totalorder %s65, %s81
      %p83 = scmp.eq.s32.totalorder %s31, 0
      %p84 = por %p82, %p83
      %s85 = ssub.s32 %s25, %s32
      %p86 = scmp.eq.s32.totalorder %s85, 0
      %s88 = sadd.s32 %s87, 1
      %s89 = scalar_select %p86, %s87, %s88
      %p92 = pneg %p86
      %p93 = scmp.eq.s32.totalorder %s25, 1
      %p94 = por %p92, %p93
      %p95 = scmp.ne.s32.totalorder %s87, %s90
      %p96 = scmp.eq.s32.totalorder %s25, 0
      %p97 = por %p95, %p96
      %p98 = scmp.ne.s32.totalorder %s87, %s90
      %p99 = scmp.eq.s32.totalorder %s30, 1
      %p100 = por %p98, %p99
      %p101 = scmp.ne.s32.totalorder %s90, %s91
      %p102 = scmp.eq.s32.totalorder %s30, 0
      %p103 = por %p101, %p102
      %p104 = scmp.ne.s32.totalorder %s90, %s91
      %p105 = scmp.eq.s32.totalorder %s31, 1
      %p106 = por %p104, %p105
      %p108 = scmp.ne.s32.totalorder %s91, %s107
      %p109 = scmp.eq.s32.totalorder %s31, 0
      %p110 = por %p108, %p109
      %s112 = sadd.s32 %s111, 1
      %p115 = scmp.eq.s32.totalorder %s25, 1
      %p116 = scmp.ne.s32.totalorder %s111, %s113
      %p117 = scmp.eq.s32.totalorder %s25, 0
      %p118 = por %p116, %p117
      %p119 = scmp.ne.s32.totalorder %s111, %s113
      %p120 = scmp.eq.s32.totalorder %s30, 1
      %p121 = por %p119, %p120
      %p122 = scmp.ne.s32.totalorder %s113, %s114
      %p123 = scmp.eq.s32.totalorder %s30, 0
      %p124 = por %p122, %p123
      %p125 = scmp.ne.s32.totalorder %s113, %s114
      %p126 = scmp.eq.s32.totalorder %s31, 1
      %p127 = por %p125, %p126
      %p129 = scmp.ne.s32.totalorder %s114, %s128
      %p130 = scmp.eq.s32.totalorder %s31, 0
      %p131 = por %p129, %p130
      %s132 = ssub.s32 %s25, %s32
      %p133 = scmp.eq.s32.totalorder %s132, 0
      %s135 = sadd.s32 %s134, 1
      %s136 = scalar_select %p133, %s134, %s135
      %p139 = pneg %p133
      %p140 = scmp.eq.s32.totalorder %s25, 1
      %p141 = por %p139, %p140
      %p142 = scmp.ne.s32.totalorder %s134, %s137
      %p143 = scmp.eq.s32.totalorder %s25, 0
      %p144 = por %p142, %p143
      %p145 = scmp.ne.s32.totalorder %s134, %s137
      %p146 = scmp.eq.s32.totalorder %s30, 1
      %p147 = por %p145, %p146
      %p148 = scmp.ne.s32.totalorder %s137, %s138
      %p149 = scmp.eq.s32.totalorder %s30, 0
      %p150 = por %p148, %p149
      %p151 = scmp.ne.s32.totalorder %s137, %s138
      %p152 = scmp.eq.s32.totalorder %s31, 1
      %p153 = por %p151, %p152
      %p155 = scmp.ne.s32.totalorder %s138, %s154
      %p156 = scmp.eq.s32.totalorder %s31, 0
      %p157 = por %p155, %p156
      %s158 = ssub.s32 %s25, %s32
      %p159 = scmp.eq.s32.totalorder %s158, 0
      %s161 = sadd.s32 %s160, 1
      %s162 = scalar_select %p159, %s160, %s161
      %p165 = pneg %p159
      %p166 = scmp.eq.s32.totalorder %s25, 1
      %p167 = por %p165, %p166
      %p168 = scmp.ne.s32.totalorder %s160, %s163
      %p169 = scmp.eq.s32.totalorder %s25, 0
      %p170 = por %p168, %p169
      %p171 = scmp.ne.s32.totalorder %s160, %s163
      %p172 = scmp.eq.s32.totalorder %s30, 1
      %p173 = por %p171, %p172
      %p174 = scmp.ne.s32.totalorder %s163, %s164
      %p175 = scmp.eq.s32.totalorder %s30, 0
      %p176 = por %p174, %p175
      %p177 = scmp.ne.s32.totalorder %s163, %s164
      %p178 = scmp.eq.s32.totalorder %s31, 1
      %p179 = por %p177, %p178
      %p181 = scmp.ne.s32.totalorder %s164, %s180
      %p182 = scmp.eq.s32.totalorder %s31, 0
      %p183 = por %p181, %p182
      %p184 = scmp.le.s32.totalorder 1, %s25
      %p185 = scmp.lt.s32.totalorder %s25, 3
      %p186 = pnand %p184, %p185
      %p187 = pneg %p186
      // Predicated region
      $region9: #{tpu_custom_call.1} parent=5 // pred_check
        _
      $region10: #{tpu_custom_call.1} parent=5 // pred_check_branch
        %189 = sbr.rel (%p186) target = $region12
      $region11: #{tpu_custom_call.1} parent=5 // pred_region
        %s190 = ssub.s32 %s25, 1
        // Predicated region
        $region13: #{tpu_custom_call.1} parent=11 // pred_check
          %p191 = pneg %p124
        $region14: #{tpu_custom_call.1} parent=11 // pred_check_branch
          %193 = sbr.rel (%p191) target = $region16
        $region15: #{tpu_custom_call.1} parent=11 // pred_region
          %s195 = ssub.s32 16, 16
          %196 = vsyncadd [#allocation5], %s195
          %s198 = sshll.u32 %s3, 4
          %s199 = int_to_ptr.vmem [resolvable:$true] %s198
          %201 = dma.vmem_to_smem %s199, 16, [#allocation9], [#allocation5]
        $region16: #{tpu_custom_call.1} parent=11 // pred_fallthru
          _
      $region12: #{tpu_custom_call.1} parent=5 // pred_fallthru
        _
      %p202 = scmp.lt.s32.totalorder %s25, 2
      // Predicated region
      $region17: #{tpu_custom_call.1} parent=5 // pred_check
        %p203 = pneg %p202
      $region18: #{tpu_custom_call.1} parent=5 // pred_check_branch
        %205 = sbr.rel (%p203) target = $region20
      $region19: #{tpu_custom_call.1} parent=5 // pred_region
        // Predicated region
        $region21: #{tpu_custom_call.1} parent=19 // pred_check
          %p206 = pneg %p45
        $region22: #{tpu_custom_call.1} parent=19 // pred_check_branch
          %208 = sbr.rel (%p206) target = $region24
        $region23: #{tpu_custom_call.1} parent=19 // pred_region
          %s209 = sand.u32 %s35, 1
          %s210 = scalar_lea.sflag [#allocation3], %s209
          %s211 = sand.u32 %s35, 1
          %s212 = smul.addr %s211, 64
          %s213 = scalar_lea.vmem [#allocation2], %s212
          %s214 = smul.u32 4, %s25
          %s216 = ssub.s32 1024, 1024
          %217 = vsyncadd %s210, %s216
          %s218 = smul.addr %s214, 128
          %s219 = scalar_lea.hbm %s0, %s218
          %s220 = sshll.u32 %s213, 4
          %s221 = int_to_ptr.vmem [resolvable:$true] %s220
          %226 = dma.hbm_to_vmem [thread:$0]  %s219, 1024, %s221, %s210, 1024, 512, 32
        $region24: #{tpu_custom_call.1} parent=19 // pred_fallthru
          _
        // Predicated region
        $region25: #{tpu_custom_call.1} parent=19 // pred_check
          %p227 = pneg %p71
        $region26: #{tpu_custom_call.1} parent=19 // pred_check_branch
          %229 = sbr.rel (%p227) target = $region28
        $region27: #{tpu_custom_call.1} parent=19 // pred_region
          %s230 = sand.u32 %s25, 1
          %s231 = scalar_lea.sflag [#allocation7], %s230
          %s232 = sand.u32 %s61, 1
          %s233 = smul.addr %s232, 4
          %s234 = scalar_lea.vmem [#allocation6], %s233
          %s235 = smul.u32 4, %s25
          %s237 = ssub.s32 64, 64
          %238 = vsyncadd %s231, %s237
          %s239 = smul.addr %s235, 16
          %s240 = scalar_lea.hbm %s1, %s239
          %s242 = sshll.u32 %s234, 4
          %s243 = int_to_ptr.vmem [resolvable:$true] %s242
          %245 = dma.hbm_to_vmem [thread:$0]  %s240, 64, %s243, %s231
        $region28: #{tpu_custom_call.1} parent=19 // pred_fallthru
          _
        // Predicated region
        $region29: #{tpu_custom_call.1} parent=19 // pred_check
          %p246 = pneg %p97
        $region30: #{tpu_custom_call.1} parent=19 // pred_check_branch
          %248 = sbr.rel (%p246) target = $region32
        $region31: #{tpu_custom_call.1} parent=19 // pred_region
          %s249 = sand.u32 %s25, 1
          %s250 = scalar_lea.sflag [#allocation7], %s249
          %s251 = sand.u32 %s87, 1
          %s252 = smul.addr %s251, 4
          %s253 = scalar_lea.vmem [#allocation8], %s252
          %s254 = smul.u32 4, %s25
          %s256 = ssub.s32 64, 64
          %257 = vsyncadd %s250, %s256
          %s258 = smul.addr %s254, 16
          %s259 = scalar_lea.hbm %s2, %s258
          %s261 = sshll.u32 %s253, 4
          %s262 = int_to_ptr.vmem [resolvable:$true] %s261
          %264 = dma.hbm_to_vmem [thread:$0]  %s259, 64, %s262, %s250
        $region32: #{tpu_custom_call.1} parent=19 // pred_fallthru
          _
      $region20: #{tpu_custom_call.1} parent=5 // pred_fallthru
        _
      %p265 = scmp.le.s32.totalorder 1, %s25
      %p266 = scmp.lt.s32.totalorder %s25, 3
      %p267 = pnand %p265, %p266
      %p268 = pneg %p267
      // Predicated region
      $region33: #{tpu_custom_call.1} parent=5 // pred_check
        _
      $region34: #{tpu_custom_call.1} parent=5 // pred_check_branch
        %270 = sbr.rel (%p267) target = $region36
      $region35: #{tpu_custom_call.1} parent=5 // pred_region
        %s271 = ssub.s32 %s25, 1
        %s272 = sand.u32 %s38, 1
        %s273 = scalar_lea.sflag [#allocation3], %s272
        %s274 = sand.u32 %s38, 1
        %s275 = smul.addr %s274, 64
        %s276 = scalar_lea.vmem [#allocation2], %s275
        // Predicated region
        $region37: #{tpu_custom_call.1} parent=35 // pred_check
          %p277 = pneg %p51
        $region38: #{tpu_custom_call.1} parent=35 // pred_check_branch
          %279 = sbr.rel (%p277) target = $region40
        $region39: #{tpu_custom_call.1} parent=35 // pred_region
          %280 = dma.done %s273, 1024
        $region40: #{tpu_custom_call.1} parent=35 // pred_fallthru
          _
        %s281 = sand.u32 %s30, 1
        %s282 = scalar_lea.sflag [#allocation7], %s281
        %s283 = sand.u32 %s64, 1
        %s284 = smul.addr %s283, 4
        %s285 = scalar_lea.vmem [#allocation6], %s284
        // Predicated region
        $region41: #{tpu_custom_call.1} parent=35 // pred_check
          %p286 = pneg %p77
        $region42: #{tpu_custom_call.1} parent=35 // pred_check_branch
          %288 = sbr.rel (%p286) target = $region44
        $region43: #{tpu_custom_call.1} parent=35 // pred_region
          %289 = dma.done %s282, 64
        $region44: #{tpu_custom_call.1} parent=35 // pred_fallthru
          _
        %s290 = sand.u32 %s30, 1
        %s291 = scalar_lea.sflag [#allocation7], %s290
        %s292 = sand.u32 %s90, 1
        %s293 = smul.addr %s292, 4
        %s294 = scalar_lea.vmem [#allocation8], %s293
        // Predicated region
        $region45: #{tpu_custom_call.1} parent=35 // pred_check
          %p295 = pneg %p103
        $region46: #{tpu_custom_call.1} parent=35 // pred_check_branch
          %297 = sbr.rel (%p295) target = $region48
        $region47: #{tpu_custom_call.1} parent=35 // pred_region
          %298 = dma.done %s291, 64
        $region48: #{tpu_custom_call.1} parent=35 // pred_fallthru
          _
        // Predicated region
        $region49: #{tpu_custom_call.1} parent=35 // pred_check
          %p299 = pneg %p124
        $region50: #{tpu_custom_call.1} parent=35 // pred_check_branch
          %301 = sbr.rel (%p299) target = $region52
        $region51: #{tpu_custom_call.1} parent=35 // pred_region
          %302 = dma.done [#allocation5], 16
        $region52: #{tpu_custom_call.1} parent=35 // pred_fallthru
          _
        %303 = sfence
        %s304 = sand.u32 %s38, 1
        %s305 = scalar_lea.sflag [#allocation3], %s304
        %s306 = sand.u32 %s38, 1
        %s307 = smul.addr %s306, 64
        %s308 = scalar_lea.vmem [#allocation2], %s307
        %p309 = pneg %p51
        %p310 = pneg %p48
        %s311 = sand.u32 %s30, 1
        %s312 = scalar_lea.sflag [#allocation7], %s311
        %s313 = sand.u32 %s64, 1
        %s314 = smul.addr %s313, 4
        %s315 = scalar_lea.vmem [#allocation6], %s314
        %p316 = pneg %p77
        %p317 = pneg %p74
        %s318 = sand.u32 %s30, 1
        %s319 = scalar_lea.sflag [#allocation7], %s318
        %s320 = sand.u32 %s90, 1
        %s321 = smul.addr %s320, 4
        %s322 = scalar_lea.vmem [#allocation8], %s321
        %p323 = pneg %p103
        %p324 = pneg %p100
        %p325 = pneg %p124
        %p326 = pneg %p121
        %p327 = pneg %p150
        %p328 = pneg %p147
        %s329 = sand.u32 %s137, 1
        %s330 = scalar_lea.sflag [#allocation4], %s329
        %s331 = sand.u32 %s137, 1
        %s332 = smul.addr %s331, 4
        %s333 = scalar_lea.vmem [#allocation10], %s332
        %p334 = pneg %p176
        %p335 = pneg %p173
        %s336 = sand.u32 %s163, 1
        %s337 = scalar_lea.sflag [#allocation12], %s336
        %s338 = sand.u32 %s163, 1
        %s339 = smul.addr %s338, 4
        %s340 = scalar_lea.vmem [#allocation11], %s339
        %s341 = smul.u32 4, %s30
        %s342 = smul.u32 4, %s30
        %s343 = smul.u32 4, %s30
        %s344 = smul.u32 4, %s30
        %s345 = smul.u32 4, %s30
        %v346 = vld [vmem:[%s276] sm:$0xff]
        %v347 = vld [vmem:[%s276 + $0x8] sm:$0xff]
        %v348 = vld [vmem:[%s276 + $0x10] sm:$0xff]
        %v349 = vld [vmem:[%s276 + $0x18] sm:$0xff]
        %v350 = vld [vmem:[%s276 + $0x20] sm:$0xff]
        %v351 = vld [vmem:[%s276 + $0x28] sm:$0xff]
        %v352 = vld [vmem:[%s276 + $0x30] sm:$0xff]
        %v353 = vld [vmem:[%s276 + $0x38] sm:$0xff]
        %v354 = vadd.f32 %v346, %v350
        %v355 = vrot.slane %v354, 4
        %v356 = vadd.f32 %v354, %v355
        %v357 = vrot.slane %v356, 2
        %v358 = vadd.f32 %v356, %v357
        %v359 = vrot.slane %v358, 1
        %v360 = vadd.f32 %v358, %v359
        %v361 = vadd.f32 %v347, %v351
        %v362 = vrot.slane %v361, 4
        %v363 = vadd.f32 %v361, %v362
        %v364 = vrot.slane %v363, 2
        %v365 = vadd.f32 %v363, %v364
        %v366 = vrot.slane %v365, 1
        %v367 = vadd.f32 %v365, %v366
        %v368 = vadd.f32 %v348, %v352
        %v369 = vrot.slane %v368, 4
        %v370 = vadd.f32 %v368, %v369
        %v371 = vrot.slane %v370, 2
        %v372 = vadd.f32 %v370, %v371
        %v373 = vrot.slane %v372, 1
        %v374 = vadd.f32 %v372, %v373
        %v375 = vadd.f32 %v349, %v353
        %v376 = vrot.slane %v375, 4
        %v377 = vadd.f32 %v375, %v376
        %v378 = vrot.slane %v377, 2
        %v379 = vadd.f32 %v377, %v378
        %v380 = vrot.slane %v379, 1
        %v381 = vadd.f32 %v379, %v380
        %v382 = vmul.f32 %v346, %v346
        %v383 = vmul.f32 %v347, %v347
        %v384 = vmul.f32 %v348, %v348
        %v385 = vmul.f32 %v349, %v349
        %v386 = vmul.f32 %v350, %v350
        %v387 = vmul.f32 %v351, %v351
        %v388 = vmul.f32 %v352, %v352
        %v389 = vmul.f32 %v353, %v353
        %v390 = vadd.f32 %v382, %v386
        %v391 = vrot.slane %v390, 4
        %v392 = vadd.f32 %v390, %v391
        %v393 = vrot.slane %v392, 2
        %v394 = vadd.f32 %v392, %v393
        %v395 = vrot.slane %v394, 1
        %v396 = vadd.f32 %v394, %v395
        %v397 = vadd.f32 %v383, %v387
        %v398 = vrot.slane %v397, 4
        %v399 = vadd.f32 %v397, %v398
        %v400 = vrot.slane %v399, 2
        %v401 = vadd.f32 %v399, %v400
        %v402 = vrot.slane %v401, 1
        %v403 = vadd.f32 %v401, %v402
        %v404 = vadd.f32 %v384, %v388
        %v405 = vrot.slane %v404, 4
        %v406 = vadd.f32 %v404, %v405
        %v407 = vrot.slane %v406, 2
        %v408 = vadd.f32 %v406, %v407
        %v409 = vrot.slane %v408, 1
        %v410 = vadd.f32 %v408, %v409
        %v411 = vadd.f32 %v385, %v389
        %v412 = vrot.slane %v411, 4
        %v413 = vadd.f32 %v411, %v412
        %v414 = vrot.slane %v413, 2
        %v415 = vadd.f32 %v413, %v414
        %v416 = vrot.slane %v415, 1
        %v417 = vadd.f32 %v415, %v416
        %v418 = vmul.f32 %v360, 0.0625
        %v419 = vmul.f32 %v367, 0.0625
        %v420 = vmul.f32 %v374, 0.0625
        %v421 = vmul.f32 %v381, 0.0625
        %v422 = vmul.f32 %v396, 0.0625
        %v423 = vmul.f32 %v403, 0.0625
        %v424 = vmul.f32 %v410, 0.0625
        %v425 = vmul.f32 %v417, 0.0625
        %v426 = vmul.f32 %v418, %v418
        %v427 = vmul.f32 %v419, %v419
        %v428 = vmul.f32 %v420, %v420
        %v429 = vmul.f32 %v421, %v421
        %v430 = vsub.f32 %v422, %v426
        %v431 = vsub.f32 %v423, %v427
        %v432 = vsub.f32 %v424, %v428
        %v433 = vsub.f32 %v425, %v429
        %v434 = vmax.f32 %v430, 0.0
        %v435 = vmax.f32 %v431, 0.0
        %v436 = vmax.f32 %v432, 0.0
        %v437 = vmax.f32 %v433, 0.0
        %v438 = vld [vmem:[%s285] sm:$0xf]
        %v439 = vld [vmem:[%s294] sm:$0xf]
        %v441 = vlaneseq
        %v442 = vshrl.u32 %v441, 7
        %v443 = vsub.s32 0, %v442
        %v444 = vrot.slane %v438, %v443
        %v445 = vlaneseq
        %v446 = vshrl.u32 %v445, 7
        %v447 = vsub.s32 1, %v446
        %v448 = vrot.slane %v438, %v447
        %v449 = vlaneseq
        %v450 = vshrl.u32 %v449, 7
        %v451 = vsub.s32 2, %v450
        %v452 = vrot.slane %v438, %v451
        %v453 = vlaneseq
        %v454 = vshrl.u32 %v453, 7
        %v455 = vsub.s32 3, %v454
        %v456 = vrot.slane %v438, %v455
        %v461 = vsub.f32 %v418, %v444
        %v462 = vsub.f32 %v419, %v448
        %v463 = vsub.f32 %v420, %v452
        %v464 = vsub.f32 %v421, %v456
        %s465 = sld [smem:[#allocation9]]
        %v466 = vstv %s465
        %v467 = vmul.f32 %v466, %v438
        %s468 = sld [smem:[#allocation9 + $0x1]]
        %v469 = vstv %s468
        %v470 = vmul.f32 %v469, %v418
        %v471 = vmul.f32 %v469, %v419
        %v472 = vmul.f32 %v469, %v420
        %v473 = vmul.f32 %v469, %v421
        %v478 = vcombine.low %v470, %v471
        %v479 = vcombine.low %v472, %v473
        %v481 = vunpack.c.l.s4 1966171168
        %v482 = vunpack.c.0.s8 %v481
        %v483 = vlaneseq
        %v484 = vshrl.u32 %v483, 7
        %v485 = vsub.s32 %v482, %v484
        %v486 = vrot.slane %v478, %v485
        %v488 = vunpack.c.l.s4 1966171168
        %v489 = vunpack.c.0.s8 %v488
        %v490 = vlaneseq
        %v491 = vshrl.u32 %v490, 7
        %v492 = vsub.s32 %v489, %v491
        %v493 = vrot.slane %v479, %v492
        %v494 = vcombine.low %v486, %v493
        %v496 = vunpack.c.l.s4 1966171168
        %v497 = vunpack.c.0.s8 %v496
        %v498 = vlaneseq
        %v499 = vshrl.u32 %v498, 7
        %v500 = vsub.s32 %v497, %v499
        %v501 = vrot.slane %v494, %v500
        %v503 = vadd.f32 %v467, %v501
        %v504 = vlaneseq
        %vm505 = vcmp.ge.s32.totalorder %v504, 0
        %vm506 = vcmp.lt.s32.totalorder %v504, 512
        %vm507 = vmand %vm505, %vm506
        %508 = vst.msk [vmem:[%s333] sm:$0xf] %vm507, %v503
        %s509 = sld [smem:[#allocation9 + $0x2]]
        %v510 = vstv %s509
        %v511 = vmul.f32 %v510, %v439
        %s512 = sld [smem:[#allocation9 + $0x3]]
        %v513 = vstv %s512
        %v514 = vmul.f32 %v513, %v434
        %v515 = vmul.f32 %v513, %v435
        %v516 = vmul.f32 %v513, %v436
        %v517 = vmul.f32 %v513, %v437
        %v522 = vcombine.low %v514, %v515
        %v523 = vcombine.low %v516, %v517
        %v525 = vunpack.c.l.s4 1966171168
        %v526 = vunpack.c.0.s8 %v525
        %v527 = vlaneseq
        %v528 = vshrl.u32 %v527, 7
        %v529 = vsub.s32 %v526, %v528
        %v530 = vrot.slane %v522, %v529
        %v532 = vunpack.c.l.s4 1966171168
        %v533 = vunpack.c.0.s8 %v532
        %v534 = vlaneseq
        %v535 = vshrl.u32 %v534, 7
        %v536 = vsub.s32 %v533, %v535
        %v537 = vrot.slane %v523, %v536
        %v538 = vcombine.low %v530, %v537
        %v540 = vunpack.c.l.s4 1966171168
        %v541 = vunpack.c.0.s8 %v540
        %v542 = vlaneseq
        %v543 = vshrl.u32 %v542, 7
        %v544 = vsub.s32 %v541, %v543
        %v545 = vrot.slane %v538, %v544
        %v547 = vadd.f32 %v511, %v545
        %s548 = sld [smem:[#allocation9 + $0x4]]
        %v549 = vmul.f32 %v461, %v461
        %v550 = vmul.f32 %v462, %v462
        %v551 = vmul.f32 %v463, %v463
        %v552 = vmul.f32 %v464, %v464
        %v553 = vstv %s548
        %v554 = vmul.f32 %v553, %v549
        %v555 = vmul.f32 %v553, %v550
        %v556 = vmul.f32 %v553, %v551
        %v557 = vmul.f32 %v553, %v552
        %v562 = vcombine.low %v554, %v555
        %v563 = vcombine.low %v556, %v557
        %v565 = vunpack.c.l.s4 1966171168
        %v566 = vunpack.c.0.s8 %v565
        %v567 = vlaneseq
        %v568 = vshrl.u32 %v567, 7
        %v569 = vsub.s32 %v566, %v568
        %v570 = vrot.slane %v562, %v569
        %v572 = vunpack.c.l.s4 1966171168
        %v573 = vunpack.c.0.s8 %v572
        %v574 = vlaneseq
        %v575 = vshrl.u32 %v574, 7
        %v576 = vsub.s32 %v573, %v575
        %v577 = vrot.slane %v563, %v576
        %v578 = vcombine.low %v570, %v577
        %v580 = vunpack.c.l.s4 1966171168
        %v581 = vunpack.c.0.s8 %v580
        %v582 = vlaneseq
        %v583 = vshrl.u32 %v582, 7
        %v584 = vsub.s32 %v581, %v583
        %v585 = vrot.slane %v578, %v584
        %v587 = vadd.f32 %v547, %v585
        %588 = vst.msk [vmem:[%s340] sm:$0xf] %vm507, %v587
        %s589 = sand.u32 %s137, 1
        %s590 = scalar_lea.sflag [#allocation4], %s589
        %s591 = sand.u32 %s137, 1
        %s592 = smul.addr %s591, 4
        %s593 = scalar_lea.vmem [#allocation10], %s592
        %s594 = sand.u32 %s163, 1
        %s595 = scalar_lea.sflag [#allocation12], %s594
        %s596 = sand.u32 %s163, 1
        %s597 = smul.addr %s596, 4
        %s598 = scalar_lea.vmem [#allocation11], %s597
        // Predicated region
        $region53: #{tpu_custom_call.1} parent=35 // pred_check
          %p599 = pneg %p147
        $region54: #{tpu_custom_call.1} parent=35 // pred_check_branch
          %601 = sbr.rel (%p599) target = $region56
        $region55: #{tpu_custom_call.1} parent=35 // pred_region
          %s602 = smul.u32 4, %s30
          %s604 = ssub.s32 64, 64
          %605 = vsyncadd %s590, %s604
          %s606 = smul.addr %s602, 16
          %s607 = scalar_lea.hbm %s4, %s606
          %s609 = sshll.u32 %s593, 4
          %s610 = int_to_ptr.vmem [resolvable:$true] %s609
          %612 = dma.vmem_to_hbm [thread:$0]  %s610, 64, %s607, %s590
        $region56: #{tpu_custom_call.1} parent=35 // pred_fallthru
          _
        // Predicated region
        $region57: #{tpu_custom_call.1} parent=35 // pred_check
          %p613 = pneg %p173
        $region58: #{tpu_custom_call.1} parent=35 // pred_check_branch
          %615 = sbr.rel (%p613) target = $region60
        $region59: #{tpu_custom_call.1} parent=35 // pred_region
          %s616 = smul.u32 4, %s30
          %s618 = ssub.s32 64, 64
          %619 = vsyncadd %s595, %s618
          %s620 = smul.addr %s616, 16
          %s621 = scalar_lea.hbm %s5, %s620
          %s623 = sshll.u32 %s598, 4
          %s624 = int_to_ptr.vmem [resolvable:$true] %s623
          %626 = dma.vmem_to_hbm [thread:$0]  %s624, 64, %s621, %s595
        $region60: #{tpu_custom_call.1} parent=35 // pred_fallthru
          _
      $region36: #{tpu_custom_call.1} parent=5 // pred_fallthru
        _
      %p627 = scmp.le.s32.totalorder 2, %s25
      // Predicated region
      $region61: #{tpu_custom_call.1} parent=5 // pred_check
        %p628 = pneg %p627
      $region62: #{tpu_custom_call.1} parent=5 // pred_check_branch
        %630 = sbr.rel (%p628) target = $region64
      $region63: #{tpu_custom_call.1} parent=5 // pred_region
        %s631 = ssub.s32 %s25, 2
        // Predicated region
        $region65: #{tpu_custom_call.1} parent=63 // pred_check
          %p632 = pneg %p153
        $region66: #{tpu_custom_call.1} parent=63 // pred_check_branch
          %634 = sbr.rel (%p632) target = $region68
        $region67: #{tpu_custom_call.1} parent=63 // pred_region
          %s635 = sand.u32 %s138, 1
          %s636 = scalar_lea.sflag [#allocation4], %s635
          %s637 = sand.u32 %s138, 1
          %s638 = smul.addr %s637, 4
          %s639 = scalar_lea.vmem [#allocation10], %s638
          %640 = dma.done %s636, 64
        $region68: #{tpu_custom_call.1} parent=63 // pred_fallthru
          _
        // Predicated region
        $region69: #{tpu_custom_call.1} parent=63 // pred_check
          %p641 = pneg %p179
        $region70: #{tpu_custom_call.1} parent=63 // pred_check_branch
          %643 = sbr.rel (%p641) target = $region72
        $region71: #{tpu_custom_call.1} parent=63 // pred_region
          %s644 = sand.u32 %s164, 1
          %s645 = scalar_lea.sflag [#allocation12], %s644
          %s646 = sand.u32 %s164, 1
          %s647 = smul.addr %s646, 4
          %s648 = scalar_lea.vmem [#allocation11], %s647
          %649 = dma.done %s645, 64
        $region72: #{tpu_custom_call.1} parent=63 // pred_fallthru
          _
      $region64: #{tpu_custom_call.1} parent=5 // pred_fallthru
        _
    $region6: #{tpu_custom_call.1} parent=1 // loop_footer
      %s29 = sadd.s32 1, %s25
    $region7: #{tpu_custom_call.1} parent=1 // loop_footer_branch
      %24 = sbr.rel target = $region3
    $region8: #{tpu_custom_call.1} parent=1 // loop_exit
      _
    %650 = vsyncpa [#allocation3], 1
    %s651 = scalar_lea.sflag [#allocation3], 1
    %652 = vsyncpa %s651, 1
    %653 = vsyncpa [#allocation7], 1
    %s654 = scalar_lea.sflag [#allocation7], 1
    %655 = vsyncpa %s654, 1
    %656 = vsyncpa [#allocation4], 1
    %s657 = scalar_lea.sflag [#allocation4], 1
    %658 = vsyncpa %s657, 1
    %659 = vsyncpa [#allocation12], 1
    %s660 = scalar_lea.sflag [#allocation12], 1
    %661 = vsyncpa %s660, 1
    %662 = vsyncpa [#allocation5], 1
    %s663 = scalar_lea.sflag [#allocation5], 1
    %664 = vsyncpa %s663, 1

</llo_original>
